<compile_context>
chip_gen: v6e
topology: v6e:2x2x1
jax: 0.10.0
libtpu: 0.0.40
codegen_flags: <defaults>
</compile_context>

<pallas_src>
import functools

import jax
import jax.numpy as jnp
from jax import lax
from jax.experimental import pallas as pl
from jax.experimental.pallas import tpu as pltpu

HIDDEN_SIZE = 32
BATCH = 8
LAYER_DEPTH = 2          # n_layers in the PyTorch module
VOCAB_RT, VOCAB_RE, VOCAB_RM = 17, 13, 11

_GATE_PAD = 128                                   # each GRU gate padded to a full lane block
_V_TOTAL = VOCAB_RT + VOCAB_RE + VOCAB_RM         # 41 rows in the fused embedding table
_V_PAD = ((_V_TOTAL + 7) // 8) * 8                # 48 (sublane multiple)


def gru_encoder_kernel(n_layers, v_pad, ids_ref, p_ref, h_ref, o_ref):
    """One token step: embedded = sum of 3 table rows; h' = GRUCell(x, hidden) applied n_layers x.

    Packed-parameter blob layout (rows; gate g lives in lanes [g*128, g*128+H)):
      [0          : v_pad     )  tabW = emb_table @ W_ih_packed   (embedding folded into layer-0 proj)
      [v_pad      : v_pad +  H)  W_ih_packed
      [v_pad +  H : v_pad + 2H)  W_hh_packed
      row  v_pad + 2H            [b_ir+b_hr | b_iz+b_hz | b_in]
      row  v_pad + 2H + 1        [    0     |     0     | b_hn ]  (stays hidden-side: r*(gh_n+b_hn))
    """
    B, H = h_ref.shape
    GP = _GATE_PAD
    r_wih = v_pad
    r_whh = v_pad + H
    r_b1 = v_pad + 2 * H
    r_b2 = r_b1 + 1

    # Fused embedding lookup + layer-0 projection: one-hot over the concatenated (rt|re|rm) table
    # hits tabW = table @ W_ih directly.  Correctness relies on the pre-offset ids being disjoint
    # and in range (< total vocab); the wrapper guarantees this for valid rt/re/rm.
    ids = ids_ref[...]                                           # (B, 3) int32
    iota_v = lax.broadcasted_iota(jnp.int32, (B, v_pad), 1)
    onehot = ((iota_v == ids[:, 0:1])
              | (iota_v == ids[:, 1:2])
              | (iota_v == ids[:, 2:3])).astype(jnp.float32)     # (B, v_pad)

    h = h_ref[...].astype(jnp.float32)                           # (B, H)
    tabW = p_ref[0:v_pad, :]                                     # (v_pad, 3*GP)
    w_ih = p_ref[r_wih:r_wih + H, :]                             # (H, 3*GP)
    w_hh = p_ref[r_whh:r_whh + H, :]                             # (H, 3*GP)
    b_r = p_ref[r_b1:r_b1 + 1, 0:H]                              # (1, H) = b_ir + b_hr
    b_z = p_ref[r_b1:r_b1 + 1, GP:GP + H]                        # (1, H) = b_iz + b_hz
    b_in = p_ref[r_b1:r_b1 + 1, 2 * GP:2 * GP + H]               # (1, H)
    b_hn = p_ref[r_b2:r_b2 + 1, 2 * GP:2 * GP + H]               # (1, H)

    # Loop-invariant hidden-side gates; r/z biases folded in here so the layer loop has no bias adds.
    gh = jnp.dot(h, w_hh, preferred_element_type=jnp.float32)    # (B, 3*GP)
    ghb_r = gh[:, 0:H] + b_r
    ghb_z = gh[:, GP:GP + H] + b_z
    ghb_n = gh[:, 2 * GP:2 * GP + H] + b_hn
    b_in_b = jnp.broadcast_to(b_in, (B, H))                      # hoisted: broadcast emitted once

    def gru_from_gi(gi):
        # Every gate slice starts on a 128-lane boundary -> lane-offset-0 views, no XLU rotates.
        r = jax.nn.sigmoid(gi[:, 0:H] + ghb_r)
        z = jax.nn.sigmoid(gi[:, GP:GP + H] + ghb_z)
        n = jnp.tanh(gi[:, 2 * GP:2 * GP + H] + b_in_b + r * ghb_n)
        return (1.0 - z) * n + z * h                             # (B, H)

    # Layer 0 with the embedding folded in: gi0 = onehot @ (table @ W_ih).
    x = gru_from_gi(jnp.dot(onehot, tabW, preferred_element_type=jnp.float32))

    # Layers 1..n_layers-1 reuse the same fixed hidden (matches the PyTorch module).
    def step(_, x):
        return gru_from_gi(jnp.dot(x, w_ih, preferred_element_type=jnp.float32))

    out = lax.fori_loop(0, n_layers - 1, step, x, unroll=True)
    o_ref[...] = out.astype(o_ref.dtype)
    # (B, H)=(8,32) masked store kept as-is: a lane-dense relayout would cost more than it saves.
    # TODO(synk): the loop-invariant hh matmul could be merged with the layer-0 matmul as a
    # block-diagonal dot, but at these sizes that doubles weight-DMA bytes for one saved MXU push.


def prepare_encoder_params(params):
    """One-time prep: fold the embedding table into the layer-0 projection, pack + 128-lane-pad the
    GRU gates, pre-add the r/z biases, and concatenate everything into a single f32 blob so the
    kernel takes 3 operands (ids, params, hidden)."""
    H = params["weight_hh"].shape[1]
    GP = _GATE_PAD

    def pack_pad(w):  # torch (3H, H), gates (r,z,n) -> (H, 3*GP); gate g at lanes [g*GP, g*GP+H)
        blocks = []
        for g in range(3):
            wg_t = jnp.transpose(w[g * H:(g + 1) * H, :])        # (H, H): x @ wg_t == x @ W_g.T
            blocks.append(jnp.pad(wg_t, ((0, 0), (0, GP - H))))
        return jnp.concatenate(blocks, axis=1)

    def pad_lane(v):  # (H,) -> (GP,)
        return jnp.pad(v, (0, GP - H))

    w_ih_pp = pack_pad(params["weight_ih"]).astype(jnp.float32)  # (H, 3*GP)
    w_hh_pp = pack_pad(params["weight_hh"]).astype(jnp.float32)

    # Concatenated embedding table [rt | re | rm], folded into W_ih:  tabW = table @ W_ih_packed.
    table = jnp.concatenate([params["emb_rt"], params["emb_re"], params["emb_rm"]], axis=0)
    table = jnp.pad(table, ((0, _V_PAD - table.shape[0]), (0, 0))).astype(jnp.float32)
    tabW = jnp.matmul(table, w_ih_pp, precision=lax.Precision.HIGHEST)     # (V_PAD, 3*GP)

    bih = params["bias_ih"].reshape(3, H)
    bhh = params["bias_hh"].reshape(3, H)
    b_gi_row = jnp.concatenate([pad_lane(bih[0] + bhh[0]),
                                pad_lane(bih[1] + bhh[1]),
                                pad_lane(bih[2])])                          # (3*GP,)
    b_hn_row = jnp.concatenate([jnp.zeros(2 * GP, jnp.float32), pad_lane(bhh[2])])

    blob = jnp.concatenate(
        [tabW, w_ih_pp, w_hh_pp, b_gi_row[None, :], b_hn_row[None, :]], axis=0)
    pad_rows = (-blob.shape[0]) % 8
    blob = jnp.pad(blob, ((0, pad_rows), (0, 0))).astype(jnp.float32)       # (120, 384)
    return blob


def _make_ids(rt, re, rm):
    # Disjoint offsets into the concatenated table; caller must keep rt/re/rm within their vocabs.
    return jnp.stack([rt, re + VOCAB_RT, rm + VOCAB_RT + VOCAB_RE], axis=-1).astype(jnp.int32)


def encoder_rnn_forward_seq(rt, re, rm, hidden, params_blob, *, n_layers=LAYER_DEPTH):
    """Sequence-fused EncoderRNN: rt/re/rm are (T, B); one pallas_call with grid over T.

    Weights/biases/hidden use constant index_maps so they are DMA'd once and stay VMEM-resident;
    only the tiny (B, 3) ids block and the (B, H) output block move per step."""
    ids = _make_ids(rt, re, rm)                                   # (T, B, 3)
    T, B, _ = ids.shape
    H = hidden.shape[-1]

    return pl.pallas_call(
        functools.partial(gru_encoder_kernel, n_layers, _V_PAD),
        out_shape=jax.ShapeDtypeStruct((T, B, H), jnp.float32),
        grid=(T,),
        in_specs=[
            pl.BlockSpec((None, B, 3), lambda t: (t, 0, 0)),      # per-step token ids
            pl.BlockSpec(params_blob.shape, lambda t: (0, 0)),    # resident packed params
            pl.BlockSpec((B, H), lambda t: (0, 0)),               # resident fixed hidden
        ],
        out_specs=pl.BlockSpec((None, B, H), lambda t: (t, 0, 0)),
        compiler_params=pltpu.CompilerParams(
            dimension_semantics=("arbitrary",)),                  # keep on one TensorCore (incl. v7x)
    )(ids, params_blob, hidden)


def encoder_rnn_forward(rt, re, rm, hidden, params_blob, *, n_layers=LAYER_DEPTH):
    """Single-step EncoderRNN.forward(rt, re, rm, hidden) — matches the PyTorch module."""
    return encoder_rnn_forward_seq(rt[None], re[None], rm[None], hidden, params_blob,
                                   n_layers=n_layers)[0]


def _reference_forward(rt, re, rm, hidden, params, *, n_layers=LAYER_DEPTH):
    """Pure-JAX reference matching torch.nn.GRUCell semantics (fixed hidden per layer)."""
    emb = (params["emb_rt"][rt] + params["emb_re"][re] + params["emb_rm"][rm]).astype(jnp.float32)
    H = hidden.shape[1]
    wih, whh = params["weight_ih"], params["weight_hh"]
    bih, bhh = params["bias_ih"], params["bias_hh"]
    x = emb
    for _ in range(n_layers):
        gi = x @ wih.T + bih
        gh = hidden @ whh.T + bhh
        i_r, i_z, i_n = gi[:, :H], gi[:, H:2 * H], gi[:, 2 * H:]
        h_r, h_z, h_n = gh[:, :H], gh[:, H:2 * H], gh[:, 2 * H:]
        r = jax.nn.sigmoid(i_r + h_r)
        z = jax.nn.sigmoid(i_z + h_z)
        n = jnp.tanh(i_n + r * h_n)
        x = (1.0 - z) * n + z * hidden
    return x


def init_params(key, hidden_size=HIDDEN_SIZE):
    ks = jax.random.split(key, 7)
    bound = 1.0 / jnp.sqrt(hidden_size)
    u = lambda k, shape: jax.random.uniform(k, shape, jnp.float32, -bound, bound)
    return {
        "emb_rt": u(ks[0], (VOCAB_RT, hidden_size)),
        "emb_re": u(ks[1], (VOCAB_RE, hidden_size)),
        "emb_rm": u(ks[2], (VOCAB_RM, hidden_size)),
        "weight_ih": u(ks[3], (3 * hidden_size, hidden_size)),
        "weight_hh": u(ks[4], (3 * hidden_size, hidden_size)),
        "bias_ih": u(ks[5], (3 * hidden_size,)),
        "bias_hh": u(ks[6], (3 * hidden_size,)),
    }


if __name__ == "__main__":
    key = jax.random.PRNGKey(0)
    k_params, k_rt, k_re, k_rm, k_h, k_seq = jax.random.split(key, 6)

    params = init_params(k_params)
    blob = prepare_encoder_params(params)                 # one-time param prep (hoisted)

    rt = jax.random.randint(k_rt, (BATCH,), 0, VOCAB_RT)
    re = jax.random.randint(k_re, (BATCH,), 0, VOCAB_RE)
    rm = jax.random.randint(k_rm, (BATCH,), 0, VOCAB_RM)
    hidden0 = jnp.zeros((BATCH, HIDDEN_SIZE), jnp.float32)                 # EncoderRNN.initHidden
    hidden1 = jax.random.normal(k_h, (BATCH, HIDDEN_SIZE), jnp.float32)    # exercise the hh path

    fwd = jax.jit(encoder_rnn_forward)
    out0 = jax.block_until_ready(fwd(rt, re, rm, hidden0, blob))
    out1 = jax.block_until_ready(fwd(rt, re, rm, hidden1, blob))

    ref0 = _reference_forward(rt, re, rm, hidden0, params)
    ref1 = _reference_forward(rt, re, rm, hidden1, params)
    assert out0.shape == (BATCH, HIDDEN_SIZE)
    assert jnp.allclose(out0, ref0, atol=1e-4, rtol=1e-4)
    assert jnp.allclose(out1, ref1, atol=1e-4, rtol=1e-4)

    # Sequence-fused variant: amortizes dispatch + param DMA across T steps.
    T = 4
    k_srt, k_sre, k_srm = jax.random.split(k_seq, 3)
    rt_s = jax.random.randint(k_srt, (T, BATCH), 0, VOCAB_RT)
    re_s = jax.random.randint(k_sre, (T, BATCH), 0, VOCAB_RE)
    rm_s = jax.random.randint(k_srm, (T, BATCH), 0, VOCAB_RM)
    fwd_seq = jax.jit(encoder_rnn_forward_seq)
    out_s = jax.block_until_ready(fwd_seq(rt_s, re_s, rm_s, hidden1, blob))
    assert out_s.shape == (T, BATCH, HIDDEN_SIZE)
    for t in range(T):
        ref_t = _reference_forward(rt_s[t], re_s[t], rm_s[t], hidden1, params)
        assert jnp.allclose(out_s[t], ref_t, atol=1e-4, rtol=1e-4)

    print("KERNEL_OK")
</pallas_src>

<mosaic_0001>
module attributes {stable_mosaic.version = 11 : i64} {
  func.func @gru_encoder_kernel(%arg0: i32, %arg1: memref<1x8x3xi32, #tpu.memory_space<vmem>>, %arg2: memref<120x384xf32, #tpu.memory_space<vmem>>, %arg3: memref<8x32xf32, #tpu.memory_space<vmem>>, %arg4: memref<1x8x32xf32, #tpu.memory_space<vmem>>) attributes {dimension_semantics = [#tpu.dimension_semantics<arbitrary>], iteration_bounds = array<i64: 1>, scalar_prefetch = 0 : i64, scratch_operands = 0 : i64, tpu.core_type = #tpu.core_type<tc>, window_params = [{transform_indices = @transform_0, window_bounds = array<i64: 1, 8, 3>}, {pipeline_mode = #tpu.pipeline_mode<synchronous>, transform_indices = @transform_1, window_bounds = array<i64: 120, 384>}, {pipeline_mode = #tpu.pipeline_mode<synchronous>, transform_indices = @transform_2, window_bounds = array<i64: 8, 32>}, {transform_indices = @transform_3, window_bounds = array<i64: 1, 8, 32>}]} {
    %c0 = arith.constant 0 : index
    %c0_0 = arith.constant 0 : index
    %c0_1 = arith.constant 0 : index
    %0 = vector.load %arg1[%c0, %c0_0, %c0_1] : memref<1x8x3xi32, #tpu.memory_space<vmem>>, vector<1x8x3xi32>
    %1 = vector.shape_cast %0 : vector<1x8x3xi32> to vector<8x3xi32>
    %2 = tpu.iota {dimensions = array<i32: 1>} : vector<8x48xi32>
    %3 = vector.extract_strided_slice %1 {offsets = [0, 0], sizes = [8, 1], strides = [1, 1]} : vector<8x3xi32> to vector<8x1xi32>
    %4 = vector.broadcast %3 : vector<8x1xi32> to vector<8x48xi32>
    %5 = arith.cmpi eq, %2, %4 : vector<8x48xi32>
    %6 = vector.extract_strided_slice %1 {offsets = [0, 1], sizes = [8, 1], strides = [1, 1]} : vector<8x3xi32> to vector<8x1xi32>
    %7 = vector.broadcast %6 : vector<8x1xi32> to vector<8x48xi32>
    %8 = arith.cmpi eq, %2, %7 : vector<8x48xi32>
    %9 = arith.ori %5, %8 : vector<8x48xi1>
    %10 = vector.extract_strided_slice %1 {offsets = [0, 2], sizes = [8, 1], strides = [1, 1]} : vector<8x3xi32> to vector<8x1xi32>
    %11 = vector.broadcast %10 : vector<8x1xi32> to vector<8x48xi32>
    %12 = arith.cmpi eq, %2, %11 : vector<8x48xi32>
    %13 = arith.ori %9, %12 : vector<8x48xi1>
    %14 = arith.extui %13 : vector<8x48xi1> to vector<8x48xi32>
    %15 = arith.sitofp %14 : vector<8x48xi32> to vector<8x48xf32>
    %c0_2 = arith.constant 0 : index
    %c0_3 = arith.constant 0 : index
    %16 = vector.load %arg3[%c0_2, %c0_3] : memref<8x32xf32, #tpu.memory_space<vmem>>, vector<8x32xf32>
    %c0_4 = arith.constant 0 : index
    %c0_5 = arith.constant 0 : index
    %17 = vector.load %arg2[%c0_4, %c0_5] : memref<120x384xf32, #tpu.memory_space<vmem>>, vector<48x384xf32>
    %c48 = arith.constant 48 : index
    %c0_6 = arith.constant 0 : index
    %18 = vector.load %arg2[%c48, %c0_6] : memref<120x384xf32, #tpu.memory_space<vmem>>, vector<32x384xf32>
    %c80 = arith.constant 80 : index
    %c0_7 = arith.constant 0 : index
    %19 = vector.load %arg2[%c80, %c0_7] : memref<120x384xf32, #tpu.memory_space<vmem>>, vector<32x384xf32>
    %c112 = arith.constant 112 : index
    %c0_8 = arith.constant 0 : index
    %20 = vector.load %arg2[%c112, %c0_8] : memref<120x384xf32, #tpu.memory_space<vmem>>, vector<1x32xf32>
    %c112_9 = arith.constant 112 : index
    %c128 = arith.constant 128 : index
    %21 = vector.load %arg2[%c112_9, %c128] : memref<120x384xf32, #tpu.memory_space<vmem>>, vector<1x32xf32>
    %c112_10 = arith.constant 112 : index
    %c256 = arith.constant 256 : index
    %22 = vector.load %arg2[%c112_10, %c256] : memref<120x384xf32, #tpu.memory_space<vmem>>, vector<1x32xf32>
    %c113 = arith.constant 113 : index
    %c256_11 = arith.constant 256 : index
    %23 = vector.load %arg2[%c113, %c256_11] : memref<120x384xf32, #tpu.memory_space<vmem>>, vector<1x32xf32>
    %cst = arith.constant dense<0.000000e+00> : vector<8x384xf32>
    %24 = tpu.matmul %16, %19, %cst {dimension_numbers = #tpu.dot_dimension_numbers<[1], [0], [0], [1], [0, 0, 1, 1], [], []>} : vector<8x32xf32>, vector<32x384xf32>, vector<8x384xf32> -> vector<8x384xf32>
    %25 = vector.extract_strided_slice %24 {offsets = [0, 0], sizes = [8, 32], strides = [1, 1]} : vector<8x384xf32> to vector<8x32xf32>
    %26 = vector.broadcast %20 : vector<1x32xf32> to vector<8x32xf32>
    %27 = arith.addf %25, %26 : vector<8x32xf32>
    %28 = vector.extract_strided_slice %24 {offsets = [0, 128], sizes = [8, 32], strides = [1, 1]} : vector<8x384xf32> to vector<8x32xf32>
    %29 = vector.broadcast %21 : vector<1x32xf32> to vector<8x32xf32>
    %30 = arith.addf %28, %29 : vector<8x32xf32>
    %31 = vector.extract_strided_slice %24 {offsets = [0, 256], sizes = [8, 32], strides = [1, 1]} : vector<8x384xf32> to vector<8x32xf32>
    %32 = vector.broadcast %23 : vector<1x32xf32> to vector<8x32xf32>
    %33 = arith.addf %31, %32 : vector<8x32xf32>
    %34 = vector.shape_cast %22 : vector<1x32xf32> to vector<1x32xf32>
    %35 = vector.broadcast %34 : vector<1x32xf32> to vector<8x32xf32>
    %cst_12 = arith.constant dense<0.000000e+00> : vector<8x384xf32>
    %36 = tpu.matmul %15, %17, %cst_12 {dimension_numbers = #tpu.dot_dimension_numbers<[1], [0], [0], [1], [0, 0, 1, 1], [], []>} : vector<8x48xf32>, vector<48x384xf32>, vector<8x384xf32> -> vector<8x384xf32>
    %37 = vector.extract_strided_slice %36 {offsets = [0, 0], sizes = [8, 32], strides = [1, 1]} : vector<8x384xf32> to vector<8x32xf32>
    %38 = arith.addf %37, %27 : vector<8x32xf32>
    %39 = arith.negf %38 : vector<8x32xf32>
    %40 = math.exp %39 : vector<8x32xf32>
    %cst_13 = arith.constant 1.000000e+00 : f32
    %41 = vector.broadcast %cst_13 : f32 to vector<8x32xf32>
    %42 = arith.addf %41, %40 : vector<8x32xf32>
    %43 = arith.divf %41, %42 : vector<8x32xf32>
    %44 = vector.extract_strided_slice %36 {offsets = [0, 128], sizes = [8, 32], strides = [1, 1]} : vector<8x384xf32> to vector<8x32xf32>
    %45 = arith.addf %44, %30 : vector<8x32xf32>
    %46 = arith.negf %45 : vector<8x32xf32>
    %47 = math.exp %46 : vector<8x32xf32>
    %cst_14 = arith.constant 1.000000e+00 : f32
    %48 = vector.broadcast %cst_14 : f32 to vector<8x32xf32>
    %49 = arith.addf %48, %47 : vector<8x32xf32>
    %50 = arith.divf %48, %49 : vector<8x32xf32>
    %51 = vector.extract_strided_slice %36 {offsets = [0, 256], sizes = [8, 32], strides = [1, 1]} : vector<8x384xf32> to vector<8x32xf32>
    %52 = arith.addf %51, %35 : vector<8x32xf32>
    %53 = arith.mulf %43, %33 : vector<8x32xf32>
    %54 = arith.addf %52, %53 : vector<8x32xf32>
    %55 = math.tanh %54 : vector<8x32xf32>
    %cst_15 = arith.constant 1.000000e+00 : f32
    %56 = vector.broadcast %cst_15 : f32 to vector<8x32xf32>
    %57 = arith.subf %56, %50 : vector<8x32xf32>
    %58 = arith.mulf %57, %55 : vector<8x32xf32>
    %59 = arith.mulf %50, %16 : vector<8x32xf32>
    %60 = arith.addf %58, %59 : vector<8x32xf32>
    %c0_i32 = arith.constant 0 : i32
    %cst_16 = arith.constant dense<0.000000e+00> : vector<8x384xf32>
    %61 = tpu.matmul %60, %18, %cst_16 {dimension_numbers = #tpu.dot_dimension_numbers<[1], [0], [0], [1], [0, 0, 1, 1], [], []>} : vector<8x32xf32>, vector<32x384xf32>, vector<8x384xf32> -> vector<8x384xf32>
    %62 = vector.extract_strided_slice %61 {offsets = [0, 0], sizes = [8, 32], strides = [1, 1]} : vector<8x384xf32> to vector<8x32xf32>
    %63 = arith.addf %62, %27 : vector<8x32xf32>
    %64 = arith.negf %63 : vector<8x32xf32>
    %65 = math.exp %64 : vector<8x32xf32>
    %cst_17 = arith.constant 1.000000e+00 : f32
    %66 = vector.broadcast %cst_17 : f32 to vector<8x32xf32>
    %67 = arith.addf %66, %65 : vector<8x32xf32>
    %68 = arith.divf %66, %67 : vector<8x32xf32>
    %69 = vector.extract_strided_slice %61 {offsets = [0, 128], sizes = [8, 32], strides = [1, 1]} : vector<8x384xf32> to vector<8x32xf32>
    %70 = arith.addf %69, %30 : vector<8x32xf32>
    %71 = arith.negf %70 : vector<8x32xf32>
    %72 = math.exp %71 : vector<8x32xf32>
    %cst_18 = arith.constant 1.000000e+00 : f32
    %73 = vector.broadcast %cst_18 : f32 to vector<8x32xf32>
    %74 = arith.addf %73, %72 : vector<8x32xf32>
    %75 = arith.divf %73, %74 : vector<8x32xf32>
    %76 = vector.extract_strided_slice %61 {offsets = [0, 256], sizes = [8, 32], strides = [1, 1]} : vector<8x384xf32> to vector<8x32xf32>
    %77 = arith.addf %76, %35 : vector<8x32xf32>
    %78 = arith.mulf %68, %33 : vector<8x32xf32>
    %79 = arith.addf %77, %78 : vector<8x32xf32>
    %80 = math.tanh %79 : vector<8x32xf32>
    %cst_19 = arith.constant 1.000000e+00 : f32
    %81 = vector.broadcast %cst_19 : f32 to vector<8x32xf32>
    %82 = arith.subf %81, %75 : vector<8x32xf32>
    %83 = arith.mulf %82, %80 : vector<8x32xf32>
    %84 = arith.mulf %75, %16 : vector<8x32xf32>
    %85 = arith.addf %83, %84 : vector<8x32xf32>
    %c0_20 = arith.constant 0 : index
    %c0_21 = arith.constant 0 : index
    %c0_22 = arith.constant 0 : index
    %86 = vector.load %arg4[%c0_20, %c0_21, %c0_22] : memref<1x8x32xf32, #tpu.memory_space<vmem>>, vector<1x8x32xf32>
    %87 = vector.shape_cast %86 : vector<1x8x32xf32> to vector<8x32xf32>
    %88 = vector.shape_cast %85 : vector<8x32xf32> to vector<1x8x32xf32>
    tpu.vector_store %arg4[%c0_20, %c0_21, %c0_22], %88 {strides = array<i32>} : memref<1x8x32xf32, #tpu.memory_space<vmem>>, vector<1x8x32xf32>,
    return
  }
  func.func @transform_0(%arg0: i32) -> (i32, i32, i32) {
    %c0_i32 = arith.constant 0 : i32
    %c0_i32_0 = arith.constant 0 : i32
    %c0_i32_1 = arith.constant 0 : i32
    return %arg0, %c0_i32, %c0_i32_0 : i32, i32, i32
  }
  func.func @transform_1(%arg0: i32) -> (i32, i32) {
    %c0_i32 = arith.constant 0 : i32
    %c0_i32_0 = arith.constant 0 : i32
    %c0_i32_1 = arith.constant 0 : i32
    return %c0_i32, %c0_i32_0 : i32, i32
  }
  func.func @transform_2(%arg0: i32) -> (i32, i32) {
    %c0_i32 = arith.constant 0 : i32
    %c0_i32_0 = arith.constant 0 : i32
    %c0_i32_1 = arith.constant 0 : i32
    return %c0_i32, %c0_i32_0 : i32, i32
  }
  func.func @transform_3(%arg0: i32) -> (i32, i32, i32) {
    %c0_i32 = arith.constant 0 : i32
    %c0_i32_0 = arith.constant 0 : i32
    %c0_i32_1 = arith.constant 0 : i32
    return %arg0, %c0_i32, %c0_i32_0 : i32, i32, i32
  }
}

</mosaic_0001>

<llo_original>
// kernel: encoder_rnn_forward.1
$region0: #{encoder_rnn_forward.1}
  #allocation0 [shape = 'u32[]', space=smem, size = 0x4, offset = 0x4, fixed_abs, tag = 'smem constant byte address 0x4 - core index']
  #allocation1 [shape = 'u32[144,128]{1,0:T(1,128)}', space=vmem, size = 0x12000, scoped, tag = 'internal scratch']
  %s0 = inlined_call_operand.vmem [shape: s32[1,8,3], index: 0, kind: input, shape index: {}]
  %s1 = inlined_call_operand.hbm [shape: f32[120,384], index: 1, kind: input, shape index: {}]
  %s2 = inlined_call_operand.vmem [shape: f32[8,32], index: 2, kind: input, shape index: {}]
  %s3 = inlined_call_operand.hbm [shape: f32[1,8,32], index: 3, kind: output, shape index: {}]
  %s4 = sld [smem:[#allocation0]]
  $region26: #{encoder_rnn_forward.1} parent=0
    _
  %s6 = ssub.s32 1, %s4
  %s7 = scalar_select 0, %s6, %s4
  $region1: #{encoder_rnn_forward.1} parent=0
    #allocation2 [shape = 'u8[184320]{0}', space=vmem, size = 0x2d000, scoped, tag = 'input window, operand 1, single buffered']
    #allocation3 [shape = 's32[1]{0}', space=sflag, size = 0x4, scoped, tag = 'scoped memory for encoder_rnn_forward.1']
    #allocation4 [shape = 's32[1]{0}', space=sflag, size = 0x4, scoped, tag = 'scoped memory for encoder_rnn_forward.1']
    #allocation5 [shape = 'u8[4096]{0}', space=vmem, size = 0x1000, scoped, tag = 'output window, operand 0, single buffered']
    %8 = vsyncpa [#allocation3], 0
    %9 = vsyncpa [#allocation4], 0
    // Predicated region
    $region2: #{encoder_rnn_forward.1} parent=1 // pred_check
      _
    $region3: #{encoder_rnn_forward.1} parent=1 // pred_check_branch
      %11 = sbr.rel (0) target = $region5
    $region4: #{encoder_rnn_forward.1} parent=1 // pred_region
      _
    $region5: #{encoder_rnn_forward.1} parent=1 // pred_fallthru
      _
    // Predicated region
    $region6: #{encoder_rnn_forward.1} parent=1 // pred_check
      _
    $region7: #{encoder_rnn_forward.1} parent=1 // pred_check_branch
      %13 = sbr.rel (0) target = $region9
    $region8: #{encoder_rnn_forward.1} parent=1 // pred_region
      %s15 = ssub.s32 5760, 5760
      %16 = vsyncadd [#allocation3], %s15
      %s17 = sshll.u32 [#allocation2], 4
      %s18 = int_to_ptr.vmem [resolvable:$true] %s17
      %23 = dma.hbm_to_vmem [thread:$0]  %s1, 5760, %s18, [#allocation3], 384, 384, 24
    $region9: #{encoder_rnn_forward.1} parent=1 // pred_fallthru
      _
    // Predicated region
    $region10: #{encoder_rnn_forward.1} parent=1 // pred_check
      _
    $region11: #{encoder_rnn_forward.1} parent=1 // pred_check_branch
      %25 = sbr.rel (0) target = $region13
    $region12: #{encoder_rnn_forward.1} parent=1 // pred_region
      _
    $region13: #{encoder_rnn_forward.1} parent=1 // pred_fallthru
      _
    // Predicated region
    $region14: #{encoder_rnn_forward.1} parent=1 // pred_check
      _
    $region15: #{encoder_rnn_forward.1} parent=1 // pred_check_branch
      %27 = sbr.rel (0) target = $region17
    $region16: #{encoder_rnn_forward.1} parent=1 // pred_region
      %28 = dma.done [#allocation3], 5760
    $region17: #{encoder_rnn_forward.1} parent=1 // pred_fallthru
      _
    %v29 = vld [vmem:[%s0] sm:$0xff]
    %v30 = vlaneseq
    %v31 = vand.u32 %v30, 127
    %32 = vset.pattern.permute.xlu0 0
    %33 = vperm.xlu0 %32, %v29
    %v34 = vpop.permute.xlu0 %33
    %vm35 = vcmp.eq.s32.totalorder %v31, %v34
    %36 = vset.pattern.permute.xlu0 1
    %37 = vperm.xlu0 %36, %v29
    %v38 = vpop.permute.xlu0 %37
    %vm39 = vcmp.eq.s32.totalorder %v31, %v38
    %vm40 = vmor %vm35, %vm39
    %41 = vset.pattern.permute.xlu0 2
    %42 = vperm.xlu0 %41, %v29
    %v43 = vpop.permute.xlu0 %42
    %vm44 = vcmp.eq.s32.totalorder %v31, %v43
    %vm45 = vmor %vm40, %vm44
    %v46 = vsel %vm45, 1, 0
    %v47 = vcvt.s32.f32 %v46
    %v48 = vld [vmem:[%s2] sm:$0xff]
    %v49 = vld [vmem:[#allocation2] sm:$0xff]
    %v50 = vld [vmem:[#allocation2 + $0x8] sm:$0xff]
    %v51 = vld [vmem:[#allocation2 + $0x10] sm:$0xff]
    %v52 = vld [vmem:[#allocation2 + $0x18] sm:$0xff]
    %v53 = vld [vmem:[#allocation2 + $0x20] sm:$0xff]
    %v54 = vld [vmem:[#allocation2 + $0x28] sm:$0xff]
    %v55 = vld [vmem:[#allocation2 + $0x30] sm:$0xff]
    %v56 = vld [vmem:[#allocation2 + $0x38] sm:$0xff]
    %v57 = vld [vmem:[#allocation2 + $0x40] sm:$0xff]
    %v58 = vld [vmem:[#allocation2 + $0x48] sm:$0xff]
    %v59 = vld [vmem:[#allocation2 + $0x50] sm:$0xff]
    %v60 = vld [vmem:[#allocation2 + $0x58] sm:$0xff]
    %v61 = vld [vmem:[#allocation2 + $0x60] sm:$0xff]
    %v62 = vld [vmem:[#allocation2 + $0x68] sm:$0xff]
    %v63 = vld [vmem:[#allocation2 + $0x70] sm:$0xff]
    %v64 = vld [vmem:[#allocation2 + $0x78] sm:$0xff]
    %v65 = vld [vmem:[#allocation2 + $0x80] sm:$0xff]
    %v66 = vld [vmem:[#allocation2 + $0x88] sm:$0xff]
    %v67 = vld [vmem:[#allocation2 + $0x90] sm:$0xff]
    %v68 = vld [vmem:[#allocation2 + $0x98] sm:$0xff]
    %v69 = vld [vmem:[#allocation2 + $0xa0] sm:$0xff]
    %v70 = vld [vmem:[#allocation2 + $0xa8] sm:$0xff]
    %v71 = vld [vmem:[#allocation2 + $0xb0] sm:$0xff]
    %v72 = vld [vmem:[#allocation2 + $0xb8] sm:$0xff]
    %v73 = vld [vmem:[#allocation2 + $0xc0] sm:$0xff]
    %v74 = vld [vmem:[#allocation2 + $0xc8] sm:$0xff]
    %v75 = vld [vmem:[#allocation2 + $0xd0] sm:$0xff]
    %v76 = vld [vmem:[#allocation2 + $0xd8] sm:$0xff]
    %v77 = vld [vmem:[#allocation2 + $0xe0] sm:$0xff]
    %v78 = vld [vmem:[#allocation2 + $0xe8] sm:$0xff]
    %v79 = vld [vmem:[#allocation2 + $0xf0] sm:$0xff]
    %v80 = vld [vmem:[#allocation2 + $0xf8] sm:$0xff]
    %v81 = vld [vmem:[#allocation2 + $0x100] sm:$0xff]
    %v82 = vld [vmem:[#allocation2 + $0x108] sm:$0xff]
    %v83 = vld [vmem:[#allocation2 + $0x110] sm:$0xff]
    %v84 = vld [vmem:[#allocation2 + $0x118] sm:$0xff]
    %v85 = vld [vmem:[#allocation2 + $0x120] sm:$0xff]
    %v86 = vld [vmem:[#allocation2 + $0x128] sm:$0xff]
    %v87 = vld [vmem:[#allocation2 + $0x130] sm:$0xff]
    %v88 = vld [vmem:[#allocation2 + $0x138] sm:$0xff]
    %v89 = vld [vmem:[#allocation2 + $0x140] sm:$0xff]
    %v90 = vld [vmem:[#allocation2 + $0x148] sm:$0xff]
    %v91 = vld [vmem:[#allocation2 + $0x150] ss:$0 sm:$0xff]
    %v92 = vld [vmem:[#allocation2 + $0x158] ss:$0 sm:$0xff]
    %v93 = vld [vmem:[#allocation2 + $0x160] ss:$0 sm:$0xff]
    %v94 = vld [vmem:[#allocation2 + $0x161] ss:$0 sm:$0xff]
    %vm95 = vcmask 261120
    %v97 = vsel %vm95, %v48, 0
    %99 = vmatprep.subr.mxu0 0.0
    %100 = vmatpush1.msra.mxu0 0.0
    %101 = vmatprep.subr.mxu0 0.0
    %102 = vmatpush1.msra.mxu0 0.0
    %103 = vmatprep.subr.mxu0 0.0
    %104 = vmatpush1.msra.mxu0 0.0
    %105 = vmatprep.subr.mxu0 0.0
    %106 = vmatpush1.msra.mxu0 0.0
    %107 = vmatprep.subr.mxu0 0.0
    %108 = vmatpush1.msra.mxu0 0.0
    %109 = vmatprep.subr.mxu0 0.0
    %110 = vmatpush1.msra.mxu0 0.0
    %111 = vmatprep.subr.mxu0 0.0
    %112 = vmatpush1.msra.mxu0 0.0
    %113 = vmatprep.subr.mxu0 0.0
    %114 = vmatpush1.msra.mxu0 0.0
    %115 = vmatprep.subr.mxu0 0.0
    %116 = vmatpush1.msra.mxu0 0.0
    %117 = vmatprep.subr.mxu0 0.0
    %118 = vmatpush1.msra.mxu0 0.0
    %119 = vmatprep.subr.mxu0 0.0
    %120 = vmatpush1.msra.mxu0 0.0
    %121 = vmatprep.subr.mxu0 0.0
    %122 = vmatpush1.msra.mxu0 0.0
    %123 = vmatprep.subr.mxu0 %v89
    %124 = vmatpush1.msra.mxu0 %v88
    %125 = vmatprep.subr.mxu0 %v86
    %126 = vmatpush1.msra.mxu0 %v85
    %127 = vmatprep.subr.mxu0 %v83
    %128 = vmatpush1.msra.mxu0 %v82
    %129 = vmatprep.subr.mxu0 %v80
    %130 = vmatpush1.msra.mxu0 %v79
    %131 = vmatprep.subr.mxu0 0.0
    %132 = vmatpush2.msra.mxu0 0.0
    %133 = vmatprep.subr.mxu0 0.0
    %134 = vmatpush2.msra.mxu0 0.0
    %135 = vmatprep.subr.mxu0 0.0
    %136 = vmatpush2.msra.mxu0 0.0
    %137 = vmatprep.subr.mxu0 0.0
    %138 = vmatpush2.msra.mxu0 0.0
    %139 = vmatprep.subr.mxu0 0.0
    %140 = vmatpush2.msra.mxu0 0.0
    %141 = vmatprep.subr.mxu0 0.0
    %142 = vmatpush2.msra.mxu0 0.0
    %143 = vmatprep.subr.mxu0 0.0
    %144 = vmatpush2.msra.mxu0 0.0
    %145 = vmatprep.subr.mxu0 0.0
    %146 = vmatpush2.msra.mxu0 0.0
    %147 = vmatprep.subr.mxu0 0.0
    %148 = vmatpush2.msra.mxu0 0.0
    %149 = vmatprep.subr.mxu0 0.0
    %150 = vmatpush2.msra.mxu0 0.0
    %151 = vmatprep.subr.mxu0 0.0
    %152 = vmatpush2.msra.mxu0 0.0
    %153 = vmatprep.subr.mxu0 0.0
    %154 = vmatpush2.msra.mxu0 0.0
    %155 = vmatprep.subr.mxu0 0.0
    %156 = vmatpush2.msra.mxu0 0.0
    %157 = vmatprep.subr.mxu0 0.0
    %158 = vmatpush2.msra.mxu0 0.0
    %159 = vmatprep.subr.mxu0 0.0
    %160 = vmatpush2.msra.mxu0 0.0
    %161 = vmatprep.subr.mxu0 0.0
    %162 = vmatpush2.msra.mxu0 0.0
    %163 = vmatprep.mubr.f32.mxu0 0.0
    %164 = vmatmul.mubr.f32.gmra.mxu0 %v97
    %v165 = vpop.f32.mrf.mxu0
    %v166 = vadd.f32 0.0, %v165
    %v167 = vpop.f32.mrf.mxu0
    %v168 = vadd.f32 0.0, %v167
    %169 = vdwg.mxu0
    %170 = vmatprep.subr.mxu0 0.0
    %171 = vmatpush1.msra.mxu0 0.0
    %172 = vmatprep.subr.mxu0 0.0
    %173 = vmatpush1.msra.mxu0 0.0
    %174 = vmatprep.subr.mxu0 0.0
    %175 = vmatpush1.msra.mxu0 0.0
    %176 = vmatprep.subr.mxu0 0.0
    %177 = vmatpush1.msra.mxu0 0.0
    %178 = vmatprep.subr.mxu0 0.0
    %179 = vmatpush1.msra.mxu0 0.0
    %180 = vmatprep.subr.mxu0 0.0
    %181 = vmatpush1.msra.mxu0 0.0
    %182 = vmatprep.subr.mxu0 0.0
    %183 = vmatpush1.msra.mxu0 0.0
    %184 = vmatprep.subr.mxu0 0.0
    %185 = vmatpush1.msra.mxu0 0.0
    %186 = vmatprep.subr.mxu0 0.0
    %187 = vmatpush1.msra.mxu0 0.0
    %188 = vmatprep.subr.mxu0 0.0
    %189 = vmatpush1.msra.mxu0 0.0
    %190 = vmatprep.subr.mxu0 0.0
    %191 = vmatpush1.msra.mxu0 0.0
    %192 = vmatprep.subr.mxu0 0.0
    %193 = vmatpush1.msra.mxu0 0.0
    %194 = vmatprep.subr.mxu0 0.0
    %195 = vmatpush1.msra.mxu0 %v90
    %196 = vmatprep.subr.mxu0 0.0
    %197 = vmatpush1.msra.mxu0 %v87
    %198 = vmatprep.subr.mxu0 0.0
    %199 = vmatpush1.msra.mxu0 %v84
    %200 = vmatprep.subr.mxu0 0.0
    %201 = vmatpush1.msra.mxu0 %v81
    %202 = vmatprep.subr.mxu0 0.0
    %203 = vmatpush2.msra.mxu0 0.0
    %204 = vmatprep.subr.mxu0 0.0
    %205 = vmatpush2.msra.mxu0 0.0
    %206 = vmatprep.subr.mxu0 0.0
    %207 = vmatpush2.msra.mxu0 0.0
    %208 = vmatprep.subr.mxu0 0.0
    %209 = vmatpush2.msra.mxu0 0.0
    %210 = vmatprep.subr.mxu0 0.0
    %211 = vmatpush2.msra.mxu0 0.0
    %212 = vmatprep.subr.mxu0 0.0
    %213 = vmatpush2.msra.mxu0 0.0
    %214 = vmatprep.subr.mxu0 0.0
    %215 = vmatpush2.msra.mxu0 0.0
    %216 = vmatprep.subr.mxu0 0.0
    %217 = vmatpush2.msra.mxu0 0.0
    %218 = vmatprep.subr.mxu0 0.0
    %219 = vmatpush2.msra.mxu0 0.0
    %220 = vmatprep.subr.mxu0 0.0
    %221 = vmatpush2.msra.mxu0 0.0
    %222 = vmatprep.subr.mxu0 0.0
    %223 = vmatpush2.msra.mxu0 0.0
    %224 = vmatprep.subr.mxu0 0.0
    %225 = vmatpush2.msra.mxu0 0.0
    %226 = vmatprep.subr.mxu0 0.0
    %227 = vmatpush2.msra.mxu0 0.0
    %228 = vmatprep.subr.mxu0 0.0
    %229 = vmatpush2.msra.mxu0 0.0
    %230 = vmatprep.subr.mxu0 0.0
    %231 = vmatpush2.msra.mxu0 0.0
    %232 = vmatprep.subr.mxu0 0.0
    %233 = vmatpush2.msra.mxu0 0.0
    %234 = vmatprep.mubr.f32.mxu0 0.0
    %235 = vmatmul.mubr.f32.gmra.mxu0 %v97
    %v236 = vpop.f32.mrf.mxu0
    %v237 = vadd.f32 0.0, %v236
    %v238 = vpop.f32.mrf.mxu0
    %239 = vdwg.mxu0
    %v240 = vadd.f32 %v166, %v91
    %v241 = vadd.f32 %v168, %v92
    %v242 = vadd.f32 %v237, %v94
    %vm243 = vcmask 392192
    %v245 = vsel %vm243, %v47, 0
    %247 = vmatprep.subr.mxu0 0.0
    %248 = vmatpush1.msra.mxu0 0.0
    %249 = vmatprep.subr.mxu0 0.0
    %250 = vmatpush1.msra.mxu0 0.0
    %251 = vmatprep.subr.mxu0 0.0
    %252 = vmatpush1.msra.mxu0 0.0
    %253 = vmatprep.subr.mxu0 0.0
    %254 = vmatpush1.msra.mxu0 0.0
    %255 = vmatprep.subr.mxu0 0.0
    %256 = vmatpush1.msra.mxu0 0.0
    %257 = vmatprep.subr.mxu0 0.0
    %258 = vmatpush1.msra.mxu0 0.0
    %259 = vmatprep.subr.mxu0 0.0
    %260 = vmatpush1.msra.mxu0 0.0
    %261 = vmatprep.subr.mxu0 0.0
    %262 = vmatpush1.msra.mxu0 0.0
    %263 = vmatprep.subr.mxu0 0.0
    %264 = vmatpush1.msra.mxu0 0.0
    %265 = vmatprep.subr.mxu0 0.0
    %266 = vmatpush1.msra.mxu0 0.0
    %267 = vmatprep.subr.mxu0 %v65
    %268 = vmatpush1.msra.mxu0 %v64
    %269 = vmatprep.subr.mxu0 %v62
    %270 = vmatpush1.msra.mxu0 %v61
    %271 = vmatprep.subr.mxu0 %v59
    %272 = vmatpush1.msra.mxu0 %v58
    %273 = vmatprep.subr.mxu0 %v56
    %274 = vmatpush1.msra.mxu0 %v55
    %275 = vmatprep.subr.mxu0 %v53
    %276 = vmatpush1.msra.mxu0 %v52
    %277 = vmatprep.subr.mxu0 %v50
    %278 = vmatpush1.msra.mxu0 %v49
    %279 = vmatprep.subr.mxu0 0.0
    %280 = vmatpush2.msra.mxu0 0.0
    %281 = vmatprep.subr.mxu0 0.0
    %282 = vmatpush2.msra.mxu0 0.0
    %283 = vmatprep.subr.mxu0 0.0
    %284 = vmatpush2.msra.mxu0 0.0
    %285 = vmatprep.subr.mxu0 0.0
    %286 = vmatpush2.msra.mxu0 0.0
    %287 = vmatprep.subr.mxu0 0.0
    %288 = vmatpush2.msra.mxu0 0.0
    %289 = vmatprep.subr.mxu0 0.0
    %290 = vmatpush2.msra.mxu0 0.0
    %291 = vmatprep.subr.mxu0 0.0
    %292 = vmatpush2.msra.mxu0 0.0
    %293 = vmatprep.subr.mxu0 0.0
    %294 = vmatpush2.msra.mxu0 0.0
    %295 = vmatprep.subr.mxu0 0.0
    %296 = vmatpush2.msra.mxu0 0.0
    %297 = vmatprep.subr.mxu0 0.0
    %298 = vmatpush2.msra.mxu0 0.0
    %299 = vmatprep.subr.mxu0 0.0
    %300 = vmatpush2.msra.mxu0 0.0
    %301 = vmatprep.subr.mxu0 0.0
    %302 = vmatpush2.msra.mxu0 0.0
    %303 = vmatprep.subr.mxu0 0.0
    %304 = vmatpush2.msra.mxu0 0.0
    %305 = vmatprep.subr.mxu0 0.0
    %306 = vmatpush2.msra.mxu0 0.0
    %307 = vmatprep.subr.mxu0 0.0
    %308 = vmatpush2.msra.mxu0 0.0
    %309 = vmatprep.subr.mxu0 0.0
    %310 = vmatpush2.msra.mxu0 0.0
    %311 = vmatprep.mubr.f32.mxu0 0.0
    %312 = vmatmul.mubr.f32.gmra.mxu0 %v245
    %v313 = vpop.f32.mrf.mxu0
    %v314 = vadd.f32 0.0, %v313
    %v315 = vpop.f32.mrf.mxu0
    %v316 = vadd.f32 0.0, %v315
    %317 = vdwg.mxu0
    %318 = vmatprep.subr.mxu0 0.0
    %319 = vmatpush1.msra.mxu0 0.0
    %320 = vmatprep.subr.mxu0 0.0
    %321 = vmatpush1.msra.mxu0 0.0
    %322 = vmatprep.subr.mxu0 0.0
    %323 = vmatpush1.msra.mxu0 0.0
    %324 = vmatprep.subr.mxu0 0.0
    %325 = vmatpush1.msra.mxu0 0.0
    %326 = vmatprep.subr.mxu0 0.0
    %327 = vmatpush1.msra.mxu0 0.0
    %328 = vmatprep.subr.mxu0 0.0
    %329 = vmatpush1.msra.mxu0 0.0
    %330 = vmatprep.subr.mxu0 0.0
    %331 = vmatpush1.msra.mxu0 0.0
    %332 = vmatprep.subr.mxu0 0.0
    %333 = vmatpush1.msra.mxu0 0.0
    %334 = vmatprep.subr.mxu0 0.0
    %335 = vmatpush1.msra.mxu0 0.0
    %336 = vmatprep.subr.mxu0 0.0
    %337 = vmatpush1.msra.mxu0 0.0
    %338 = vmatprep.subr.mxu0 0.0
    %339 = vmatpush1.msra.mxu0 %v66
    %340 = vmatprep.subr.mxu0 0.0
    %341 = vmatpush1.msra.mxu0 %v63
    %342 = vmatprep.subr.mxu0 0.0
    %343 = vmatpush1.msra.mxu0 %v60
    %344 = vmatprep.subr.mxu0 0.0
    %345 = vmatpush1.msra.mxu0 %v57
    %346 = vmatprep.subr.mxu0 0.0
    %347 = vmatpush1.msra.mxu0 %v54
    %348 = vmatprep.subr.mxu0 0.0
    %349 = vmatpush1.msra.mxu0 %v51
    %350 = vmatprep.subr.mxu0 0.0
    %351 = vmatpush2.msra.mxu0 0.0
    %352 = vmatprep.subr.mxu0 0.0
    %353 = vmatpush2.msra.mxu0 0.0
    %354 = vmatprep.subr.mxu0 0.0
    %355 = vmatpush2.msra.mxu0 0.0
    %356 = vmatprep.subr.mxu0 0.0
    %357 = vmatpush2.msra.mxu0 0.0
    %358 = vmatprep.subr.mxu0 0.0
    %359 = vmatpush2.msra.mxu0 0.0
    %360 = vmatprep.subr.mxu0 0.0
    %361 = vmatpush2.msra.mxu0 0.0
    %362 = vmatprep.subr.mxu0 0.0
    %363 = vmatpush2.msra.mxu0 0.0
    %364 = vmatprep.subr.mxu0 0.0
    %365 = vmatpush2.msra.mxu0 0.0
    %366 = vmatprep.subr.mxu0 0.0
    %367 = vmatpush2.msra.mxu0 0.0
    %368 = vmatprep.subr.mxu0 0.0
    %369 = vmatpush2.msra.mxu0 0.0
    %370 = vmatprep.subr.mxu0 0.0
    %371 = vmatpush2.msra.mxu0 0.0
    %372 = vmatprep.subr.mxu0 0.0
    %373 = vmatpush2.msra.mxu0 0.0
    %374 = vmatprep.subr.mxu0 0.0
    %375 = vmatpush2.msra.mxu0 0.0
    %376 = vmatprep.subr.mxu0 0.0
    %377 = vmatpush2.msra.mxu0 0.0
    %378 = vmatprep.subr.mxu0 0.0
    %379 = vmatpush2.msra.mxu0 0.0
    %380 = vmatprep.subr.mxu0 0.0
    %381 = vmatpush2.msra.mxu0 0.0
    %382 = vmatprep.mubr.f32.mxu0 0.0
    %383 = vmatmul.mubr.f32.gmra.mxu0 %v245
    %v384 = vpop.f32.mrf.mxu0
    %v385 = vadd.f32 0.0, %v384
    %v386 = vpop.f32.mrf.mxu0
    %387 = vdwg.mxu0
    %v388 = vadd.f32 %v314, %v240
    %v389 = vxor.u32 %v388, 2147483648
    %v390 = vmul.f32 %v389, 1.442695
    %v391 = vpow.pop %v390
    %v392 = vadd.f32 %v391, 1.0
    %v393 = vrcp.pop %v392
    %v394 = vmul.f32 1.0, %v393
    %v395 = vadd.f32 %v316, %v241
    %v396 = vxor.u32 %v395, 2147483648
    %v397 = vmul.f32 %v396, 1.442695
    %v398 = vpow.pop %v397
    %v399 = vadd.f32 %v398, 1.0
    %v400 = vrcp.pop %v399
    %v401 = vmul.f32 1.0, %v400
    %v402 = vadd.f32 %v385, %v93
    %v403 = vmul.f32 %v394, %v242
    %v404 = vadd.f32 %v402, %v403
    %v405 = vtanh.pop %v404
    %v406 = vsub.f32 1.0, %v401
    %v407 = vmul.f32 %v406, %v405
    %v408 = vmul.f32 %v401, %v48
    %v409 = vadd.f32 %v407, %v408
    %v411 = vsel %vm95, %v409, 0
    %413 = vmatprep.subr.mxu0 0.0
    %414 = vmatpush1.msra.mxu0 0.0
    %415 = vmatprep.subr.mxu0 0.0
    %416 = vmatpush1.msra.mxu0 0.0
    %417 = vmatprep.subr.mxu0 0.0
    %418 = vmatpush1.msra.mxu0 0.0
    %419 = vmatprep.subr.mxu0 0.0
    %420 = vmatpush1.msra.mxu0 0.0
    %421 = vmatprep.subr.mxu0 0.0
    %422 = vmatpush1.msra.mxu0 0.0
    %423 = vmatprep.subr.mxu0 0.0
    %424 = vmatpush1.msra.mxu0 0.0
    %425 = vmatprep.subr.mxu0 0.0
    %426 = vmatpush1.msra.mxu0 0.0
    %427 = vmatprep.subr.mxu0 0.0
    %428 = vmatpush1.msra.mxu0 0.0
    %429 = vmatprep.subr.mxu0 0.0
    %430 = vmatpush1.msra.mxu0 0.0
    %431 = vmatprep.subr.mxu0 0.0
    %432 = vmatpush1.msra.mxu0 0.0
    %433 = vmatprep.subr.mxu0 0.0
    %434 = vmatpush1.msra.mxu0 0.0
    %435 = vmatprep.subr.mxu0 0.0
    %436 = vmatpush1.msra.mxu0 0.0
    %437 = vmatprep.subr.mxu0 %v77
    %438 = vmatpush1.msra.mxu0 %v76
    %439 = vmatprep.subr.mxu0 %v74
    %440 = vmatpush1.msra.mxu0 %v73
    %441 = vmatprep.subr.mxu0 %v71
    %442 = vmatpush1.msra.mxu0 %v70
    %443 = vmatprep.subr.mxu0 %v68
    %444 = vmatpush1.msra.mxu0 %v67
    %445 = vmatprep.subr.mxu0 0.0
    %446 = vmatpush2.msra.mxu0 0.0
    %447 = vmatprep.subr.mxu0 0.0
    %448 = vmatpush2.msra.mxu0 0.0
    %449 = vmatprep.subr.mxu0 0.0
    %450 = vmatpush2.msra.mxu0 0.0
    %451 = vmatprep.subr.mxu0 0.0
    %452 = vmatpush2.msra.mxu0 0.0
    %453 = vmatprep.subr.mxu0 0.0
    %454 = vmatpush2.msra.mxu0 0.0
    %455 = vmatprep.subr.mxu0 0.0
    %456 = vmatpush2.msra.mxu0 0.0
    %457 = vmatprep.subr.mxu0 0.0
    %458 = vmatpush2.msra.mxu0 0.0
    %459 = vmatprep.subr.mxu0 0.0
    %460 = vmatpush2.msra.mxu0 0.0
    %461 = vmatprep.subr.mxu0 0.0
    %462 = vmatpush2.msra.mxu0 0.0
    %463 = vmatprep.subr.mxu0 0.0
    %464 = vmatpush2.msra.mxu0 0.0
    %465 = vmatprep.subr.mxu0 0.0
    %466 = vmatpush2.msra.mxu0 0.0
    %467 = vmatprep.subr.mxu0 0.0
    %468 = vmatpush2.msra.mxu0 0.0
    %469 = vmatprep.subr.mxu0 0.0
    %470 = vmatpush2.msra.mxu0 0.0
    %471 = vmatprep.subr.mxu0 0.0
    %472 = vmatpush2.msra.mxu0 0.0
    %473 = vmatprep.subr.mxu0 0.0
    %474 = vmatpush2.msra.mxu0 0.0
    %475 = vmatprep.subr.mxu0 0.0
    %476 = vmatpush2.msra.mxu0 0.0
    %477 = vmatprep.mubr.f32.mxu0 0.0
    %478 = vmatmul.mubr.f32.gmra.mxu0 %v411
    %v479 = vpop.f32.mrf.mxu0
    %v480 = vadd.f32 0.0, %v479
    %v481 = vpop.f32.mrf.mxu0
    %v482 = vadd.f32 0.0, %v481
    %483 = vdwg.mxu0
    %484 = vmatprep.subr.mxu0 0.0
    %485 = vmatpush1.msra.mxu0 0.0
    %486 = vmatprep.subr.mxu0 0.0
    %487 = vmatpush1.msra.mxu0 0.0
    %488 = vmatprep.subr.mxu0 0.0
    %489 = vmatpush1.msra.mxu0 0.0
    %490 = vmatprep.subr.mxu0 0.0
    %491 = vmatpush1.msra.mxu0 0.0
    %492 = vmatprep.subr.mxu0 0.0
    %493 = vmatpush1.msra.mxu0 0.0
    %494 = vmatprep.subr.mxu0 0.0
    %495 = vmatpush1.msra.mxu0 0.0
    %496 = vmatprep.subr.mxu0 0.0
    %497 = vmatpush1.msra.mxu0 0.0
    %498 = vmatprep.subr.mxu0 0.0
    %499 = vmatpush1.msra.mxu0 0.0
    %500 = vmatprep.subr.mxu0 0.0
    %501 = vmatpush1.msra.mxu0 0.0
    %502 = vmatprep.subr.mxu0 0.0
    %503 = vmatpush1.msra.mxu0 0.0
    %504 = vmatprep.subr.mxu0 0.0
    %505 = vmatpush1.msra.mxu0 0.0
    %506 = vmatprep.subr.mxu0 0.0
    %507 = vmatpush1.msra.mxu0 0.0
    %508 = vmatprep.subr.mxu0 0.0
    %509 = vmatpush1.msra.mxu0 %v78
    %510 = vmatprep.subr.mxu0 0.0
    %511 = vmatpush1.msra.mxu0 %v75
    %512 = vmatprep.subr.mxu0 0.0
    %513 = vmatpush1.msra.mxu0 %v72
    %514 = vmatprep.subr.mxu0 0.0
    %515 = vmatpush1.msra.mxu0 %v69
    %516 = vmatprep.subr.mxu0 0.0
    %517 = vmatpush2.msra.mxu0 0.0
    %518 = vmatprep.subr.mxu0 0.0
    %519 = vmatpush2.msra.mxu0 0.0
    %520 = vmatprep.subr.mxu0 0.0
    %521 = vmatpush2.msra.mxu0 0.0
    %522 = vmatprep.subr.mxu0 0.0
    %523 = vmatpush2.msra.mxu0 0.0
    %524 = vmatprep.subr.mxu0 0.0
    %525 = vmatpush2.msra.mxu0 0.0
    %526 = vmatprep.subr.mxu0 0.0
    %527 = vmatpush2.msra.mxu0 0.0
    %528 = vmatprep.subr.mxu0 0.0
    %529 = vmatpush2.msra.mxu0 0.0
    %530 = vmatprep.subr.mxu0 0.0
    %531 = vmatpush2.msra.mxu0 0.0
    %532 = vmatprep.subr.mxu0 0.0
    %533 = vmatpush2.msra.mxu0 0.0
    %534 = vmatprep.subr.mxu0 0.0
    %535 = vmatpush2.msra.mxu0 0.0
    %536 = vmatprep.subr.mxu0 0.0
    %537 = vmatpush2.msra.mxu0 0.0
    %538 = vmatprep.subr.mxu0 0.0
    %539 = vmatpush2.msra.mxu0 0.0
    %540 = vmatprep.subr.mxu0 0.0
    %541 = vmatpush2.msra.mxu0 0.0
    %542 = vmatprep.subr.mxu0 0.0
    %543 = vmatpush2.msra.mxu0 0.0
    %544 = vmatprep.subr.mxu0 0.0
    %545 = vmatpush2.msra.mxu0 0.0
    %546 = vmatprep.subr.mxu0 0.0
    %547 = vmatpush2.msra.mxu0 0.0
    %548 = vmatprep.mubr.f32.mxu0 0.0
    %549 = vmatmul.mubr.f32.gmra.mxu0 %v411
    %v550 = vpop.f32.mrf.mxu0
    %v551 = vadd.f32 0.0, %v550
    %v552 = vpop.f32.mrf.mxu0
    %553 = vdwg.mxu0
    %v554 = vadd.f32 %v480, %v240
    %v555 = vxor.u32 %v554, 2147483648
    %v556 = vmul.f32 %v555, 1.442695
    %v557 = vpow.pop %v556
    %v558 = vadd.f32 %v557, 1.0
    %v559 = vrcp.pop %v558
    %v560 = vmul.f32 1.0, %v559
    %v561 = vadd.f32 %v482, %v241
    %v562 = vxor.u32 %v561, 2147483648
    %v563 = vmul.f32 %v562, 1.442695
    %v564 = vpow.pop %v563
    %v565 = vadd.f32 %v564, 1.0
    %v566 = vrcp.pop %v565
    %v567 = vmul.f32 1.0, %v566
    %v568 = vadd.f32 %v551, %v93
    %v569 = vmul.f32 %v560, %v242
    %v570 = vadd.f32 %v568, %v569
    %v571 = vtanh.pop %v570
    %v572 = vsub.f32 1.0, %v567
    %v573 = vmul.f32 %v572, %v571
    %v574 = vmul.f32 %v567, %v48
    %v575 = vadd.f32 %v573, %v574
    %576 = vst.msk [vmem:[#allocation5] sm:$0xff] %vm95, %v575
    // Predicated region
    $region18: #{encoder_rnn_forward.1} parent=1 // pred_check
      _
    $region19: #{encoder_rnn_forward.1} parent=1 // pred_check_branch
      %578 = sbr.rel (0) target = $region21
    $region20: #{encoder_rnn_forward.1} parent=1 // pred_region
      %s580 = ssub.s32 128, 128
      %581 = vsyncadd [#allocation4], %s580
      %s583 = sshll.u32 [#allocation5], 4
      %s584 = int_to_ptr.vmem [resolvable:$true] %s583
      %586 = dma.vmem_to_hbm [thread:$0]  %s584, 128, %s3, [#allocation4]
    $region21: #{encoder_rnn_forward.1} parent=1 // pred_fallthru
      _
    // Predicated region
    $region22: #{encoder_rnn_forward.1} parent=1 // pred_check
      _
    $region23: #{encoder_rnn_forward.1} parent=1 // pred_check_branch
      %588 = sbr.rel (0) target = $region25
    $region24: #{encoder_rnn_forward.1} parent=1 // pred_region
      %589 = dma.done [#allocation4], 128
    $region25: #{encoder_rnn_forward.1} parent=1 // pred_fallthru
      _
    %590 = vsyncpa [#allocation3], 1
    %591 = vsyncpa [#allocation4], 1

</llo_original>
